<compile_context>
chip_gen: v7x
topology: tpu7x:2x2x1
jax: 0.10.0
libtpu: 0.0.40
codegen_flags: <defaults>
</compile_context>

<pallas_src>
import jax
import jax.numpy as jnp
from jax.experimental import pallas as pl
from jax.experimental.pallas import tpu as pltpu

EPS = 1e-5      # nn.BatchNorm2d default eps
LANES = 128     # TPU vreg lane width


def resnet_block_kernel(x_ref, b_ref, gm_ref, gamma_ref, beta_ref, out_ref):
    """x_ref:     (N, H, L)   packed activations, L = W*Cp (lane-dense, L % 128 == 0)
       b_ref:     (3*L, L)    banded conv weights, row-block dh = kernel row dh
       gm_ref:    (L, L)      same-channel reduce/broadcast matrix, pre-divided by N*H*W
       gamma_ref: (1, L)      per-lane BN gamma (channel value replicated across W)
       beta_ref:  (1, L)      per-lane BN beta
       out_ref:   (N, H, L)
    """
    N, H, L = x_ref.shape
    R = N * H

    x3 = x_ref[...]
    Bw = b_ref[...]
    Gm = gm_ref[...]
    gammaL = gamma_ref[...]
    betaL = beta_ref[...]
    zrow = jnp.zeros((N, 1, L), jnp.float32)

    def conv(h3):
        # 3x3 'same' conv as a single MXU matmul.  H-shifts via zero-row concat;
        # W-shifts, W zero-padding and channel mixing are baked into Bw.
        h_dn = jnp.concatenate([zrow, h3[:, :H - 1, :]], axis=1)   # input row h-1
        h_up = jnp.concatenate([h3[:, 1:, :], zrow], axis=1)       # input row h+1
        h_cat = jnp.concatenate([h_dn, h3, h_up], axis=-1).reshape(R, 3 * L)
        return jnp.dot(h_cat, Bw, preferred_element_type=jnp.float32)   # (R, L)

    def bn(y):
        # Training-mode BatchNorm2d folded to a single per-lane FMA.
        s = jnp.sum(y, axis=0, keepdims=True)            # (1, L)
        ss = jnp.sum(y * y, axis=0, keepdims=True)        # (1, L)
        stats = jnp.dot(jnp.concatenate([s, ss], axis=0), Gm,
                        preferred_element_type=jnp.float32)          # (2, L)
        meanL = stats[0:1, :]                              # E[y]   per channel
        ex2L = stats[1:2, :]                               # E[y^2] per channel
        varL = ex2L - meanL * meanL                        # biased variance
        invL = jax.lax.rsqrt(varL + EPS)                   # EUP
        scaleL = gammaL * invL
        shiftL = betaL - meanL * scaleL
        return y * scaleL + shiftL

    x2 = x3.reshape(R, L)
    h1 = jnp.maximum(bn(conv(x3)), 0.0)                    # relu(bn(conv(x)))
    h2 = bn(conv(h1.reshape(N, H, L)))                     # bn(conv(h1)), shared params
    out_ref[...] = jnp.maximum(h2 + x2, 0.0).reshape(N, H, L)


def resnet_block(x_nhwc, w_hwio, bias, gamma, beta):
    """ResnetBlock forward.  NHWC activations, HWIO conv weights, NHWC output.

    `bias` is accepted for API parity with nn.Conv2d but is NOT used: a per-channel
    conv bias is exactly cancelled by the training-mode BN mean subtraction.
    """
    del bias
    N, H, W, C = x_nhwc.shape
    f32 = jnp.float32

    # Pad channels so the packed lane dim W*Cp is a multiple of 128 (vreg lane width).
    Cp = C
    while (W * Cp) % LANES != 0 and Cp < C + LANES:
        Cp += 1
    if (W * Cp) % LANES != 0:          # fallback: stay unpadded (still correct)
        Cp = C
    L = W * Cp

    # ---- activations: (N,H,W,C) -> (N,H,W*Cp), zero-filled padding channels ----
    xp = jnp.pad(x_nhwc.astype(f32), ((0, 0), (0, 0), (0, 0), (0, Cp - C)))
    xp = xp.reshape(N, H, L)

    # ---- banded conv weights:  B[dh][wi*Cp+ci, wo*Cp+co] = w[dh, wi-wo+1, ci, co] ----
    wp = jnp.zeros((3, 3, Cp, Cp), f32).at[:, :, :C, :C].set(w_hwio.astype(f32))
    S = jnp.stack([jnp.eye(W, k=1 - dj, dtype=f32) for dj in range(3)])   # (3, W, W)
    B = jnp.einsum("jxy,hjcd->hxcyd", S, wp).reshape(3 * L, L)

    # ---- same-channel reduce/broadcast matrix, pre-scaled by 1/(N*H*W) ----
    lane = jnp.arange(L)
    Gm = (lane[:, None] % Cp == lane[None, :] % Cp).astype(f32) / float(N * H * W)

    # ---- per-lane BN affine params (replicated across W; padded channels inert) ----
    gp = jnp.concatenate([gamma.astype(f32), jnp.ones((Cp - C,), f32)])
    bp = jnp.concatenate([beta.astype(f32), jnp.zeros((Cp - C,), f32)])
    gammaL = jnp.tile(gp, W).reshape(1, L)
    betaL = jnp.tile(bp, W).reshape(1, L)

    out_pk = pl.pallas_call(
        resnet_block_kernel,
        out_shape=jax.ShapeDtypeStruct((N, H, L), f32),
        grid=(1,),
        in_specs=[
            pl.BlockSpec((N, H, L), lambda i: (0, 0, 0)),
            pl.BlockSpec((3 * L, L), lambda i: (0, 0)),
            pl.BlockSpec((L, L), lambda i: (0, 0)),
            pl.BlockSpec((1, L), lambda i: (0, 0)),
            pl.BlockSpec((1, L), lambda i: (0, 0)),
        ],
        out_specs=pl.BlockSpec((N, H, L), lambda i: (0, 0, 0)),
        compiler_params=pltpu.CompilerParams(
            dimension_semantics=("arbitrary",),
            vmem_limit_bytes=32 * 1024 * 1024,
        ),
    )(xp, B, Gm, gammaL, betaL)

    # Strip channel padding, return NHWC.
    return out_pk.reshape(N, H, W, Cp)[..., :C]


def _reference(x_nhwc, w_hwio, bias, gamma, beta):
    """Pure-JAX reference of the PyTorch forward (training-mode BN), NHWC layout."""
    def conv(h):
        y = jax.lax.conv_general_dilated(
            h, w_hwio, window_strides=(1, 1), padding=((1, 1), (1, 1)),
            dimension_numbers=("NHWC", "HWIO", "NHWC"),
            precision=jax.lax.Precision.HIGHEST)
        return y + bias.reshape(1, 1, 1, -1)

    def bn(h):
        mean = jnp.mean(h, axis=(0, 1, 2), keepdims=True)
        var = jnp.mean((h - mean) ** 2, axis=(0, 1, 2), keepdims=True)
        return ((h - mean) * jax.lax.rsqrt(var + EPS) * gamma.reshape(1, 1, 1, -1)
                + beta.reshape(1, 1, 1, -1))

    h = jax.nn.relu(bn(conv(x_nhwc)))
    h = bn(conv(h)) + x_nhwc
    return jax.nn.relu(h)


if __name__ == "__main__":
    # Small shapes; residual add requires in_ch == out_ch.
    N, C, H, W = 2, 4, 16, 16

    key = jax.random.PRNGKey(0)
    kx, kw, kb = jax.random.split(key, 3)

    x = jax.random.normal(kx, (N, H, W, C), jnp.float32)          # NHWC activations

    # Deterministic params (shapes match nn.Conv2d(C, C, 3) / nn.BatchNorm2d(C)).
    fan_in = C * 3 * 3
    bound = 1.0 / jnp.sqrt(jnp.float32(fan_in))
    w_oihw = jax.random.uniform(kw, (C, C, 3, 3), jnp.float32, -bound, bound)
    w_hwio = jnp.transpose(w_oihw, (2, 3, 1, 0))                  # one-time weight prep
    bias = jax.random.uniform(kb, (C,), jnp.float32, -bound, bound)
    gamma = jnp.ones((C,), jnp.float32)   # BatchNorm2d default weight
    beta = jnp.zeros((C,), jnp.float32)   # BatchNorm2d default bias

    out = jax.block_until_ready(resnet_block(x, w_hwio, bias, gamma, beta))
    ref = jax.block_until_ready(_reference(x, w_hwio, bias, gamma, beta))

    assert out.shape == (N, H, W, C)
    assert jnp.allclose(out, ref, atol=2e-4, rtol=2e-4), "mismatch vs JAX reference"

    print("KERNEL_OK")
</pallas_src>

<mosaic_0001>
module attributes {stable_mosaic.version = 11 : i64} {
  func.func @resnet_block_kernel(%arg0: i32, %arg1: memref<2x16x128xf32, #tpu.memory_space<vmem>>, %arg2: memref<384x128xf32, #tpu.memory_space<vmem>>, %arg3: memref<128x128xf32, #tpu.memory_space<vmem>>, %arg4: memref<1x128xf32, #tpu.memory_space<vmem>>, %arg5: memref<1x128xf32, #tpu.memory_space<vmem>>, %arg6: memref<2x16x128xf32, #tpu.memory_space<vmem>>) attributes {dimension_semantics = [#tpu.dimension_semantics<arbitrary>], iteration_bounds = array<i64: 1>, scalar_prefetch = 0 : i64, scratch_operands = 0 : i64, tpu.core_type = #tpu.core_type<tc>, window_params = [{pipeline_mode = #tpu.pipeline_mode<synchronous>, transform_indices = @transform_0, window_bounds = array<i64: 2, 16, 128>}, {pipeline_mode = #tpu.pipeline_mode<synchronous>, transform_indices = @transform_1, window_bounds = array<i64: 384, 128>}, {pipeline_mode = #tpu.pipeline_mode<synchronous>, transform_indices = @transform_2, window_bounds = array<i64: 128, 128>}, {pipeline_mode = #tpu.pipeline_mode<synchronous>, transform_indices = @transform_3, window_bounds = array<i64: 1, 128>}, {pipeline_mode = #tpu.pipeline_mode<synchronous>, transform_indices = @transform_4, window_bounds = array<i64: 1, 128>}, {pipeline_mode = #tpu.pipeline_mode<synchronous>, transform_indices = @transform_5, window_bounds = array<i64: 2, 16, 128>}]} {
    %c0 = arith.constant 0 : index
    %c0_0 = arith.constant 0 : index
    %c0_1 = arith.constant 0 : index
    %0 = vector.load %arg1[%c0, %c0_0, %c0_1] : memref<2x16x128xf32, #tpu.memory_space<vmem>>, vector<2x16x128xf32>
    %c0_2 = arith.constant 0 : index
    %c0_3 = arith.constant 0 : index
    %1 = vector.load %arg2[%c0_2, %c0_3] : memref<384x128xf32, #tpu.memory_space<vmem>>, vector<384x128xf32>
    %c0_4 = arith.constant 0 : index
    %c0_5 = arith.constant 0 : index
    %2 = vector.load %arg3[%c0_4, %c0_5] : memref<128x128xf32, #tpu.memory_space<vmem>>, vector<128x128xf32>
    %c0_6 = arith.constant 0 : index
    %c0_7 = arith.constant 0 : index
    %3 = vector.load %arg4[%c0_6, %c0_7] : memref<1x128xf32, #tpu.memory_space<vmem>>, vector<1x128xf32>
    %c0_8 = arith.constant 0 : index
    %c0_9 = arith.constant 0 : index
    %4 = vector.load %arg5[%c0_8, %c0_9] : memref<1x128xf32, #tpu.memory_space<vmem>>, vector<1x128xf32>
    %cst = arith.constant 0.000000e+00 : f32
    %5 = vector.broadcast %cst : f32 to vector<2x1x128xf32>
    %6 = vector.shape_cast %0 : vector<2x16x128xf32> to vector<32x128xf32>
    %7 = vector.extract_strided_slice %0 {offsets = [0, 0, 0], sizes = [2, 15, 128], strides = [1, 1, 1]} : vector<2x16x128xf32> to vector<2x15x128xf32>
    %8 = tpu.concatenate %5, %7 in 1 : vector<2x1x128xf32>, vector<2x15x128xf32> -> vector<2x16x128xf32>
    %9 = vector.extract_strided_slice %0 {offsets = [0, 1, 0], sizes = [2, 15, 128], strides = [1, 1, 1]} : vector<2x16x128xf32> to vector<2x15x128xf32>
    %10 = tpu.concatenate %9, %5 in 1 : vector<2x15x128xf32>, vector<2x1x128xf32> -> vector<2x16x128xf32>
    %11 = tpu.concatenate %8, %0, %10 in 2 : vector<2x16x128xf32>, vector<2x16x128xf32>, vector<2x16x128xf32> -> vector<2x16x384xf32>
    %12 = vector.shape_cast %11 : vector<2x16x384xf32> to vector<32x384xf32>
    %cst_10 = arith.constant dense<0.000000e+00> : vector<32x128xf32>
    %13 = tpu.matmul %12, %1, %cst_10 {dimension_numbers = #tpu.dot_dimension_numbers<[1], [0], [0], [1], [0, 0, 1, 1], [], []>} : vector<32x384xf32>, vector<384x128xf32>, vector<32x128xf32> -> vector<32x128xf32>
    %cst_11 = arith.constant dense<0.000000e+00> : vector<128xf32>
    %14 = vector.multi_reduction <add>, %13, %cst_11 [0] : vector<32x128xf32> to vector<128xf32>
    %15 = vector.shape_cast %14 : vector<128xf32> to vector<1x128xf32>
    %16 = arith.mulf %13, %13 : vector<32x128xf32>
    %cst_12 = arith.constant dense<0.000000e+00> : vector<128xf32>
    %17 = vector.multi_reduction <add>, %16, %cst_12 [0] : vector<32x128xf32> to vector<128xf32>
    %18 = vector.shape_cast %17 : vector<128xf32> to vector<1x128xf32>
    %19 = tpu.concatenate %15, %18 in 0 : vector<1x128xf32>, vector<1x128xf32> -> vector<2x128xf32>
    %cst_13 = arith.constant dense<0.000000e+00> : vector<2x128xf32>
    %20 = tpu.matmul %19, %2, %cst_13 {dimension_numbers = #tpu.dot_dimension_numbers<[1], [0], [0], [1], [0, 0, 1, 1], [], []>} : vector<2x128xf32>, vector<128x128xf32>, vector<2x128xf32> -> vector<2x128xf32>
    %21 = vector.extract_strided_slice %20 {offsets = [0, 0], sizes = [1, 128], strides = [1, 1]} : vector<2x128xf32> to vector<1x128xf32>
    %22 = vector.extract_strided_slice %20 {offsets = [1, 0], sizes = [1, 128], strides = [1, 1]} : vector<2x128xf32> to vector<1x128xf32>
    %23 = arith.mulf %21, %21 : vector<1x128xf32>
    %24 = arith.subf %22, %23 : vector<1x128xf32>
    %cst_14 = arith.constant 9.99999974E-6 : f32
    %25 = vector.broadcast %cst_14 : f32 to vector<1x128xf32>
    %26 = arith.addf %24, %25 : vector<1x128xf32>
    %27 = math.rsqrt %26 : vector<1x128xf32>
    %28 = arith.mulf %3, %27 : vector<1x128xf32>
    %29 = arith.mulf %21, %28 : vector<1x128xf32>
    %30 = arith.subf %4, %29 : vector<1x128xf32>
    %31 = vector.broadcast %28 : vector<1x128xf32> to vector<32x128xf32>
    %32 = arith.mulf %13, %31 : vector<32x128xf32>
    %33 = vector.broadcast %30 : vector<1x128xf32> to vector<32x128xf32>
    %34 = arith.addf %32, %33 : vector<32x128xf32>
    %cst_15 = arith.constant 0.000000e+00 : f32
    %35 = vector.broadcast %cst_15 : f32 to vector<32x128xf32>
    %36 = arith.maximumf %34, %35 : vector<32x128xf32>
    %37 = vector.shape_cast %36 : vector<32x128xf32> to vector<2x16x128xf32>
    %38 = vector.extract_strided_slice %37 {offsets = [0, 0, 0], sizes = [2, 15, 128], strides = [1, 1, 1]} : vector<2x16x128xf32> to vector<2x15x128xf32>
    %39 = tpu.concatenate %5, %38 in 1 : vector<2x1x128xf32>, vector<2x15x128xf32> -> vector<2x16x128xf32>
    %40 = vector.extract_strided_slice %37 {offsets = [0, 1, 0], sizes = [2, 15, 128], strides = [1, 1, 1]} : vector<2x16x128xf32> to vector<2x15x128xf32>
    %41 = tpu.concatenate %40, %5 in 1 : vector<2x15x128xf32>, vector<2x1x128xf32> -> vector<2x16x128xf32>
    %42 = tpu.concatenate %39, %37, %41 in 2 : vector<2x16x128xf32>, vector<2x16x128xf32>, vector<2x16x128xf32> -> vector<2x16x384xf32>
    %43 = vector.shape_cast %42 : vector<2x16x384xf32> to vector<32x384xf32>
    %cst_16 = arith.constant dense<0.000000e+00> : vector<32x128xf32>
    %44 = tpu.matmul %43, %1, %cst_16 {dimension_numbers = #tpu.dot_dimension_numbers<[1], [0], [0], [1], [0, 0, 1, 1], [], []>} : vector<32x384xf32>, vector<384x128xf32>, vector<32x128xf32> -> vector<32x128xf32>
    %cst_17 = arith.constant dense<0.000000e+00> : vector<128xf32>
    %45 = vector.multi_reduction <add>, %44, %cst_17 [0] : vector<32x128xf32> to vector<128xf32>
    %46 = vector.shape_cast %45 : vector<128xf32> to vector<1x128xf32>
    %47 = arith.mulf %44, %44 : vector<32x128xf32>
    %cst_18 = arith.constant dense<0.000000e+00> : vector<128xf32>
    %48 = vector.multi_reduction <add>, %47, %cst_18 [0] : vector<32x128xf32> to vector<128xf32>
    %49 = vector.shape_cast %48 : vector<128xf32> to vector<1x128xf32>
    %50 = tpu.concatenate %46, %49 in 0 : vector<1x128xf32>, vector<1x128xf32> -> vector<2x128xf32>
    %cst_19 = arith.constant dense<0.000000e+00> : vector<2x128xf32>
    %51 = tpu.matmul %50, %2, %cst_19 {dimension_numbers = #tpu.dot_dimension_numbers<[1], [0], [0], [1], [0, 0, 1, 1], [], []>} : vector<2x128xf32>, vector<128x128xf32>, vector<2x128xf32> -> vector<2x128xf32>
    %52 = vector.extract_strided_slice %51 {offsets = [0, 0], sizes = [1, 128], strides = [1, 1]} : vector<2x128xf32> to vector<1x128xf32>
    %53 = vector.extract_strided_slice %51 {offsets = [1, 0], sizes = [1, 128], strides = [1, 1]} : vector<2x128xf32> to vector<1x128xf32>
    %54 = arith.mulf %52, %52 : vector<1x128xf32>
    %55 = arith.subf %53, %54 : vector<1x128xf32>
    %cst_20 = arith.constant 9.99999974E-6 : f32
    %56 = vector.broadcast %cst_20 : f32 to vector<1x128xf32>
    %57 = arith.addf %55, %56 : vector<1x128xf32>
    %58 = math.rsqrt %57 : vector<1x128xf32>
    %59 = arith.mulf %3, %58 : vector<1x128xf32>
    %60 = arith.mulf %52, %59 : vector<1x128xf32>
    %61 = arith.subf %4, %60 : vector<1x128xf32>
    %62 = vector.broadcast %59 : vector<1x128xf32> to vector<32x128xf32>
    %63 = arith.mulf %44, %62 : vector<32x128xf32>
    %64 = vector.broadcast %61 : vector<1x128xf32> to vector<32x128xf32>
    %65 = arith.addf %63, %64 : vector<32x128xf32>
    %66 = arith.addf %65, %6 : vector<32x128xf32>
    %cst_21 = arith.constant 0.000000e+00 : f32
    %67 = vector.broadcast %cst_21 : f32 to vector<32x128xf32>
    %68 = arith.maximumf %66, %67 : vector<32x128xf32>
    %69 = vector.shape_cast %68 : vector<32x128xf32> to vector<2x16x128xf32>
    %c0_22 = arith.constant 0 : index
    %c0_23 = arith.constant 0 : index
    %c0_24 = arith.constant 0 : index
    %70 = vector.load %arg6[%c0_22, %c0_23, %c0_24] : memref<2x16x128xf32, #tpu.memory_space<vmem>>, vector<2x16x128xf32>
    tpu.vector_store %arg6[%c0_22, %c0_23, %c0_24], %69 {strides = array<i32>} : memref<2x16x128xf32, #tpu.memory_space<vmem>>, vector<2x16x128xf32>,
    return
  }
  func.func @transform_0(%arg0: i32) -> (i32, i32, i32) {
    %c0_i32 = arith.constant 0 : i32
    %c0_i32_0 = arith.constant 0 : i32
    %c0_i32_1 = arith.constant 0 : i32
    %c0_i32_2 = arith.constant 0 : i32
    return %c0_i32, %c0_i32_0, %c0_i32_1 : i32, i32, i32
  }
  func.func @transform_1(%arg0: i32) -> (i32, i32) {
    %c0_i32 = arith.constant 0 : i32
    %c0_i32_0 = arith.constant 0 : i32
    %c0_i32_1 = arith.constant 0 : i32
    return %c0_i32, %c0_i32_0 : i32, i32
  }
  func.func @transform_2(%arg0: i32) -> (i32, i32) {
    %c0_i32 = arith.constant 0 : i32
    %c0_i32_0 = arith.constant 0 : i32
    %c0_i32_1 = arith.constant 0 : i32
    return %c0_i32, %c0_i32_0 : i32, i32
  }
  func.func @transform_3(%arg0: i32) -> (i32, i32) {
    %c0_i32 = arith.constant 0 : i32
    %c0_i32_0 = arith.constant 0 : i32
    %c0_i32_1 = arith.constant 0 : i32
    return %c0_i32, %c0_i32_0 : i32, i32
  }
  func.func @transform_4(%arg0: i32) -> (i32, i32) {
    %c0_i32 = arith.constant 0 : i32
    %c0_i32_0 = arith.constant 0 : i32
    %c0_i32_1 = arith.constant 0 : i32
    return %c0_i32, %c0_i32_0 : i32, i32
  }
  func.func @transform_5(%arg0: i32) -> (i32, i32, i32) {
    %c0_i32 = arith.constant 0 : i32
    %c0_i32_0 = arith.constant 0 : i32
    %c0_i32_1 = arith.constant 0 : i32
    %c0_i32_2 = arith.constant 0 : i32
    return %c0_i32, %c0_i32_0, %c0_i32_1 : i32, i32, i32
  }
}

</mosaic_0001>

<llo_original>
// kernel: tpu_custom_call.1
$region0: #{tpu_custom_call.1}
  #allocation0 [shape = 'u32[]', space=smem, size = 0x4, offset = 0x4, fixed_abs, tag = 'smem constant byte address 0x4 - core index']
  #allocation1 [shape = 'u32[144,128]{1,0:T(1,128)}', space=vmem, size = 0x12000, scoped, tag = 'internal scratch']
  %s0 = inlined_call_operand.hbm [shape: f32[2,16,128], index: 0, kind: input, shape index: {}]
  %s1 = inlined_call_operand.hbm [shape: f32[384,128], index: 1, kind: input, shape index: {}]
  %s2 = inlined_call_operand.hbm [shape: f32[128,128], index: 2, kind: input, shape index: {}]
  %s3 = inlined_call_operand.vmem [shape: f32[1,128], index: 3, kind: input, shape index: {}]
  %s4 = inlined_call_operand.vmem [shape: f32[1,128], index: 4, kind: input, shape index: {}]
  %s5 = inlined_call_operand.hbm [shape: f32[2,16,128], index: 5, kind: output, shape index: {}]
  %s6 = sld [smem:[#allocation0]]
  $region42: #{tpu_custom_call.1} parent=0
    _
  %s8 = ssub.s32 1, %s6
  %s9 = scalar_select 0, %s8, %s6
  $region1: #{tpu_custom_call.1} parent=0
    #allocation2 [shape = 'u8[16384]{0}', space=vmem, size = 0x4000, scoped, tag = 'input window, operand 0, single buffered']
    #allocation3 [shape = 's32[1]{0}', space=sflag, size = 0x4, scoped, tag = 'scoped memory for tpu_custom_call.1']
    #allocation4 [shape = 's32[1]{0}', space=sflag, size = 0x4, scoped, tag = 'scoped memory for tpu_custom_call.1']
    #allocation5 [shape = 'u8[196608]{0}', space=vmem, size = 0x30000, scoped, tag = 'input window, operand 1, single buffered']
    #allocation6 [shape = 's32[1]{0}', space=sflag, size = 0x4, scoped, tag = 'scoped memory for tpu_custom_call.1']
    #allocation7 [shape = 'u8[65536]{0}', space=vmem, size = 0x10000, scoped, tag = 'input window, operand 2, single buffered']
    #allocation8 [shape = 'u8[16384]{0}', space=vmem, size = 0x4000, scoped, tag = 'output window, operand 0, single buffered']
    %10 = vsyncpa [#allocation3], 0
    %11 = vsyncpa [#allocation6], 0
    %12 = vsyncpa [#allocation4], 0
    // Predicated region
    $region2: #{tpu_custom_call.1} parent=1 // pred_check
      _
    $region3: #{tpu_custom_call.1} parent=1 // pred_check_branch
      %14 = sbr.rel (0) target = $region5
    $region4: #{tpu_custom_call.1} parent=1 // pred_region
      %s16 = ssub.s32 512, 512
      %17 = vsyncadd [#allocation3], %s16
      %s18 = sshll.u32 [#allocation2], 4
      %s19 = int_to_ptr.vmem [resolvable:$true] %s18
      %24 = dma.hbm_to_vmem [thread:$0]  %s0, 512, %s19, [#allocation3], 128, 128, 8
    $region5: #{tpu_custom_call.1} parent=1 // pred_fallthru
      _
    // Predicated region
    $region6: #{tpu_custom_call.1} parent=1 // pred_check
      _
    $region7: #{tpu_custom_call.1} parent=1 // pred_check_branch
      %26 = sbr.rel (0) target = $region9
    $region8: #{tpu_custom_call.1} parent=1 // pred_region
      %s28 = ssub.s32 6144, 6144
      %29 = vsyncadd [#allocation6], %s28
      %s30 = sshll.u32 [#allocation5], 4
      %s31 = int_to_ptr.vmem [resolvable:$true] %s30
      %36 = dma.hbm_to_vmem [thread:$0]  %s1, 6144, %s31, [#allocation6], 128, 128, 8
    $region9: #{tpu_custom_call.1} parent=1 // pred_fallthru
      _
    // Predicated region
    $region10: #{tpu_custom_call.1} parent=1 // pred_check
      _
    $region11: #{tpu_custom_call.1} parent=1 // pred_check_branch
      %38 = sbr.rel (0) target = $region13
    $region12: #{tpu_custom_call.1} parent=1 // pred_region
      %s40 = ssub.s32 2048, 2048
      %41 = vsyncadd [#allocation6], %s40
      %s42 = sshll.u32 [#allocation7], 4
      %s43 = int_to_ptr.vmem [resolvable:$true] %s42
      %48 = dma.hbm_to_vmem [thread:$0]  %s2, 2048, %s43, [#allocation6], 128, 128, 8
    $region13: #{tpu_custom_call.1} parent=1 // pred_fallthru
      _
    // Predicated region
    $region14: #{tpu_custom_call.1} parent=1 // pred_check
      _
    $region15: #{tpu_custom_call.1} parent=1 // pred_check_branch
      %50 = sbr.rel (0) target = $region17
    $region16: #{tpu_custom_call.1} parent=1 // pred_region
      _
    $region17: #{tpu_custom_call.1} parent=1 // pred_fallthru
      _
    // Predicated region
    $region18: #{tpu_custom_call.1} parent=1 // pred_check
      _
    $region19: #{tpu_custom_call.1} parent=1 // pred_check_branch
      %52 = sbr.rel (0) target = $region21
    $region20: #{tpu_custom_call.1} parent=1 // pred_region
      _
    $region21: #{tpu_custom_call.1} parent=1 // pred_fallthru
      _
    // Predicated region
    $region22: #{tpu_custom_call.1} parent=1 // pred_check
      _
    $region23: #{tpu_custom_call.1} parent=1 // pred_check_branch
      %54 = sbr.rel (0) target = $region25
    $region24: #{tpu_custom_call.1} parent=1 // pred_region
      %55 = dma.done [#allocation3], 512
    $region25: #{tpu_custom_call.1} parent=1 // pred_fallthru
      _
    // Predicated region
    $region26: #{tpu_custom_call.1} parent=1 // pred_check
      _
    $region27: #{tpu_custom_call.1} parent=1 // pred_check_branch
      %57 = sbr.rel (0) target = $region29
    $region28: #{tpu_custom_call.1} parent=1 // pred_region
      %58 = dma.done [#allocation6], 6144
    $region29: #{tpu_custom_call.1} parent=1 // pred_fallthru
      _
    // Predicated region
    $region30: #{tpu_custom_call.1} parent=1 // pred_check
      _
    $region31: #{tpu_custom_call.1} parent=1 // pred_check_branch
      %60 = sbr.rel (0) target = $region33
    $region32: #{tpu_custom_call.1} parent=1 // pred_region
      %61 = dma.done [#allocation6], 2048
    $region33: #{tpu_custom_call.1} parent=1 // pred_fallthru
      _
    %v62 = vld [vmem:[#allocation2] sm:$0xff]
    %v63 = vld [vmem:[#allocation2 + $0x8] sm:$0xff]
    %v64 = vld [vmem:[#allocation2 + $0x10] sm:$0xff]
    %v65 = vld [vmem:[#allocation2 + $0x18] sm:$0xff]
    %v66 = vld [vmem:[#allocation5] sm:$0xff]
    %v67 = vld [vmem:[#allocation5 + $0x8] sm:$0xff]
    %v68 = vld [vmem:[#allocation5 + $0x10] sm:$0xff]
    %v69 = vld [vmem:[#allocation5 + $0x18] sm:$0xff]
    %v70 = vld [vmem:[#allocation5 + $0x20] sm:$0xff]
    %v71 = vld [vmem:[#allocation5 + $0x28] sm:$0xff]
    %v72 = vld [vmem:[#allocation5 + $0x30] sm:$0xff]
    %v73 = vld [vmem:[#allocation5 + $0x38] sm:$0xff]
    %v74 = vld [vmem:[#allocation5 + $0x40] sm:$0xff]
    %v75 = vld [vmem:[#allocation5 + $0x48] sm:$0xff]
    %v76 = vld [vmem:[#allocation5 + $0x50] sm:$0xff]
    %v77 = vld [vmem:[#allocation5 + $0x58] sm:$0xff]
    %v78 = vld [vmem:[#allocation5 + $0x60] sm:$0xff]
    %v79 = vld [vmem:[#allocation5 + $0x68] sm:$0xff]
    %v80 = vld [vmem:[#allocation5 + $0x70] sm:$0xff]
    %v81 = vld [vmem:[#allocation5 + $0x78] sm:$0xff]
    %v82 = vld [vmem:[#allocation5 + $0x80] sm:$0xff]
    %v83 = vld [vmem:[#allocation5 + $0x88] sm:$0xff]
    %v84 = vld [vmem:[#allocation5 + $0x90] sm:$0xff]
    %v85 = vld [vmem:[#allocation5 + $0x98] sm:$0xff]
    %v86 = vld [vmem:[#allocation5 + $0xa0] sm:$0xff]
    %v87 = vld [vmem:[#allocation5 + $0xa8] sm:$0xff]
    %v88 = vld [vmem:[#allocation5 + $0xb0] sm:$0xff]
    %v89 = vld [vmem:[#allocation5 + $0xb8] sm:$0xff]
    %v90 = vld [vmem:[#allocation5 + $0xc0] sm:$0xff]
    %v91 = vld [vmem:[#allocation5 + $0xc8] sm:$0xff]
    %v92 = vld [vmem:[#allocation5 + $0xd0] sm:$0xff]
    %v93 = vld [vmem:[#allocation5 + $0xd8] sm:$0xff]
    %v94 = vld [vmem:[#allocation5 + $0xe0] sm:$0xff]
    %v95 = vld [vmem:[#allocation5 + $0xe8] sm:$0xff]
    %v96 = vld [vmem:[#allocation5 + $0xf0] sm:$0xff]
    %v97 = vld [vmem:[#allocation5 + $0xf8] sm:$0xff]
    %v98 = vld [vmem:[#allocation5 + $0x100] sm:$0xff]
    %v99 = vld [vmem:[#allocation5 + $0x108] sm:$0xff]
    %v100 = vld [vmem:[#allocation5 + $0x110] sm:$0xff]
    %v101 = vld [vmem:[#allocation5 + $0x118] sm:$0xff]
    %v102 = vld [vmem:[#allocation5 + $0x120] sm:$0xff]
    %v103 = vld [vmem:[#allocation5 + $0x128] sm:$0xff]
    %v104 = vld [vmem:[#allocation5 + $0x130] sm:$0xff]
    %v105 = vld [vmem:[#allocation5 + $0x138] sm:$0xff]
    %v106 = vld [vmem:[#allocation5 + $0x140] sm:$0xff]
    %v107 = vld [vmem:[#allocation5 + $0x148] sm:$0xff]
    %v108 = vld [vmem:[#allocation5 + $0x150] sm:$0xff]
    %v109 = vld [vmem:[#allocation5 + $0x158] sm:$0xff]
    %v110 = vld [vmem:[#allocation5 + $0x160] sm:$0xff]
    %v111 = vld [vmem:[#allocation5 + $0x168] sm:$0xff]
    %v112 = vld [vmem:[#allocation5 + $0x170] sm:$0xff]
    %v113 = vld [vmem:[#allocation5 + $0x178] sm:$0xff]
    %v114 = vld [vmem:[#allocation7] sm:$0xff]
    %v115 = vld [vmem:[#allocation7 + $0x8] sm:$0xff]
    %v116 = vld [vmem:[#allocation7 + $0x10] sm:$0xff]
    %v117 = vld [vmem:[#allocation7 + $0x18] sm:$0xff]
    %v118 = vld [vmem:[#allocation7 + $0x20] sm:$0xff]
    %v119 = vld [vmem:[#allocation7 + $0x28] sm:$0xff]
    %v120 = vld [vmem:[#allocation7 + $0x30] sm:$0xff]
    %v121 = vld [vmem:[#allocation7 + $0x38] sm:$0xff]
    %v122 = vld [vmem:[#allocation7 + $0x40] sm:$0xff]
    %v123 = vld [vmem:[#allocation7 + $0x48] sm:$0xff]
    %v124 = vld [vmem:[#allocation7 + $0x50] sm:$0xff]
    %v125 = vld [vmem:[#allocation7 + $0x58] sm:$0xff]
    %v126 = vld [vmem:[#allocation7 + $0x60] sm:$0xff]
    %v127 = vld [vmem:[#allocation7 + $0x68] sm:$0xff]
    %v128 = vld [vmem:[#allocation7 + $0x70] sm:$0xff]
    %v129 = vld [vmem:[#allocation7 + $0x78] sm:$0xff]
    %v130 = vld [vmem:[%s3] sm:$0x1]
    %v131 = vld [vmem:[%s4] sm:$0x1]
    %vm136 = vcmask 1040384
    %v137 = vrot.slane %v62, 7
    %v138 = vrot.slane %v63, 7
    %v139 = vsel %vm136, %v137, %v138
    %v140 = vrot.slane %v64, 7
    %v141 = vrot.slane %v65, 7
    %v142 = vsel %vm136, %v140, %v141
    %v147 = vsel %vm136, 0.0, %v137
    %v148 = vsel %vm136, 0.0, %v140
    %vm149 = vcmask 1046528
    %v150 = vrot.slane %v62, 1
    %v151 = vrot.slane %v63, 1
    %v152 = vsel %vm149, %v150, %v151
    %v153 = vrot.slane %v64, 1
    %v154 = vrot.slane %v65, 1
    %v155 = vsel %vm149, %v153, %v154
    %v160 = vsel %vm149, %v151, 0.0
    %v161 = vsel %vm149, %v154, 0.0
    %162 = vmatprep.subr.mxu0 0.0
    %163 = vmatpush1.msra.mxu0 %v66
    %164 = vmatprep.subr.mxu0 0.0
    %165 = vmatpush1.msra.mxu0 %v67
    %166 = vmatprep.subr.mxu0 0.0
    %167 = vmatpush1.msra.mxu0 %v68
    %168 = vmatprep.subr.mxu0 0.0
    %169 = vmatpush1.msra.mxu0 %v69
    %170 = vmatprep.subr.mxu0 0.0
    %171 = vmatpush1.msra.mxu0 %v70
    %172 = vmatprep.subr.mxu0 0.0
    %173 = vmatpush1.msra.mxu0 %v71
    %174 = vmatprep.subr.mxu0 0.0
    %175 = vmatpush1.msra.mxu0 %v72
    %176 = vmatprep.subr.mxu0 0.0
    %177 = vmatpush1.msra.mxu0 %v73
    %178 = vmatprep.subr.mxu0 0.0
    %179 = vmatpush1.msra.mxu0 %v74
    %180 = vmatprep.subr.mxu0 0.0
    %181 = vmatpush1.msra.mxu0 %v75
    %182 = vmatprep.subr.mxu0 0.0
    %183 = vmatpush1.msra.mxu0 %v76
    %184 = vmatprep.subr.mxu0 0.0
    %185 = vmatpush1.msra.mxu0 %v77
    %186 = vmatprep.subr.mxu0 0.0
    %187 = vmatpush1.msra.mxu0 %v78
    %188 = vmatprep.subr.mxu0 0.0
    %189 = vmatpush1.msra.mxu0 %v79
    %190 = vmatprep.subr.mxu0 0.0
    %191 = vmatpush1.msra.mxu0 %v80
    %192 = vmatprep.subr.mxu0 0.0
    %193 = vmatpush1.msra.mxu0 %v81
    %194 = vmatprep.subr.mxu0 0.0
    %195 = vmatpush1.msra.mxu0 %v82
    %196 = vmatprep.subr.mxu0 0.0
    %197 = vmatpush1.msra.mxu0 %v83
    %198 = vmatprep.subr.mxu0 0.0
    %199 = vmatpush1.msra.mxu0 %v84
    %200 = vmatprep.subr.mxu0 0.0
    %201 = vmatpush1.msra.mxu0 %v85
    %202 = vmatprep.subr.mxu0 0.0
    %203 = vmatpush1.msra.mxu0 %v86
    %204 = vmatprep.subr.mxu0 0.0
    %205 = vmatpush1.msra.mxu0 %v87
    %206 = vmatprep.subr.mxu0 0.0
    %207 = vmatpush1.msra.mxu0 %v88
    %208 = vmatprep.subr.mxu0 0.0
    %209 = vmatpush1.msra.mxu0 %v89
    %210 = vmatprep.subr.mxu0 0.0
    %211 = vmatpush1.msra.mxu0 %v90
    %212 = vmatprep.subr.mxu0 0.0
    %213 = vmatpush1.msra.mxu0 %v91
    %214 = vmatprep.subr.mxu0 0.0
    %215 = vmatpush1.msra.mxu0 %v92
    %216 = vmatprep.subr.mxu0 0.0
    %217 = vmatpush1.msra.mxu0 %v93
    %218 = vmatprep.subr.mxu0 0.0
    %219 = vmatpush1.msra.mxu0 %v94
    %220 = vmatprep.subr.mxu0 0.0
    %221 = vmatpush1.msra.mxu0 %v95
    %222 = vmatprep.subr.mxu0 0.0
    %223 = vmatpush1.msra.mxu0 %v96
    %224 = vmatprep.subr.mxu0 0.0
    %225 = vmatpush1.msra.mxu0 %v97
    %226 = vmatprep.mubr.f32.mxu0 %v62
    %227 = vmatmul.mubr.f32.gmra.mrb[0].mxu0 %v147
    %v228 = vpop.f32.mrb[0].mxu0
    %v229 = vadd.f32 0.0, %v228
    %v230 = vpop.f32.mrb[0].mxu0
    %231 = vmatprep.mubr.f32.mxu0 %v63
    %232 = vmatmul.mubr.f32.gmra.mrb[0].mxu0 %v139
    %v233 = vpop.f32.mrb[0].mxu0
    %v234 = vadd.f32 0.0, %v233
    %v235 = vpop.f32.mrb[0].mxu0
    %236 = vmatprep.mubr.f32.mxu0 %v64
    %237 = vmatmul.mubr.f32.gmra.mrb[0].mxu0 %v148
    %v238 = vpop.f32.mrb[0].mxu0
    %v239 = vadd.f32 0.0, %v238
    %v240 = vpop.f32.mrb[0].mxu0
    %241 = vmatprep.mubr.f32.mxu0 %v65
    %242 = vmatmul.mubr.f32.gmra.mrb[0].mxu0 %v142
    %v243 = vpop.f32.mrb[0].mxu0
    %v244 = vadd.f32 0.0, %v243
    %v245 = vpop.f32.mrb[0].mxu0
    %246 = vdwg.mxu0
    %247 = vmatprep.subr.mxu0 0.0
    %248 = vmatpush1.msra.mxu0 %v98
    %249 = vmatprep.subr.mxu0 0.0
    %250 = vmatpush1.msra.mxu0 %v99
    %251 = vmatprep.subr.mxu0 0.0
    %252 = vmatpush1.msra.mxu0 %v100
    %253 = vmatprep.subr.mxu0 0.0
    %254 = vmatpush1.msra.mxu0 %v101
    %255 = vmatprep.subr.mxu0 0.0
    %256 = vmatpush1.msra.mxu0 %v102
    %257 = vmatprep.subr.mxu0 0.0
    %258 = vmatpush1.msra.mxu0 %v103
    %259 = vmatprep.subr.mxu0 0.0
    %260 = vmatpush1.msra.mxu0 %v104
    %261 = vmatprep.subr.mxu0 0.0
    %262 = vmatpush1.msra.mxu0 %v105
    %263 = vmatprep.subr.mxu0 0.0
    %264 = vmatpush1.msra.mxu0 %v106
    %265 = vmatprep.subr.mxu0 0.0
    %266 = vmatpush1.msra.mxu0 %v107
    %267 = vmatprep.subr.mxu0 0.0
    %268 = vmatpush1.msra.mxu0 %v108
    %269 = vmatprep.subr.mxu0 0.0
    %270 = vmatpush1.msra.mxu0 %v109
    %271 = vmatprep.subr.mxu0 0.0
    %272 = vmatpush1.msra.mxu0 %v110
    %273 = vmatprep.subr.mxu0 0.0
    %274 = vmatpush1.msra.mxu0 %v111
    %275 = vmatprep.subr.mxu0 0.0
    %276 = vmatpush1.msra.mxu0 %v112
    %277 = vmatprep.subr.mxu0 0.0
    %278 = vmatpush1.msra.mxu0 %v113
    %279 = vmatprep.subr.mxu0 0.0
    %280 = vmatpush1.msra.mxu0 0.0
    %281 = vmatprep.subr.mxu0 0.0
    %282 = vmatpush1.msra.mxu0 0.0
    %283 = vmatprep.subr.mxu0 0.0
    %284 = vmatpush1.msra.mxu0 0.0
    %285 = vmatprep.subr.mxu0 0.0
    %286 = vmatpush1.msra.mxu0 0.0
    %287 = vmatprep.subr.mxu0 0.0
    %288 = vmatpush1.msra.mxu0 0.0
    %289 = vmatprep.subr.mxu0 0.0
    %290 = vmatpush1.msra.mxu0 0.0
    %291 = vmatprep.subr.mxu0 0.0
    %292 = vmatpush1.msra.mxu0 0.0
    %293 = vmatprep.subr.mxu0 0.0
    %294 = vmatpush1.msra.mxu0 0.0
    %295 = vmatprep.subr.mxu0 0.0
    %296 = vmatpush1.msra.mxu0 0.0
    %297 = vmatprep.subr.mxu0 0.0
    %298 = vmatpush1.msra.mxu0 0.0
    %299 = vmatprep.subr.mxu0 0.0
    %300 = vmatpush1.msra.mxu0 0.0
    %301 = vmatprep.subr.mxu0 0.0
    %302 = vmatpush1.msra.mxu0 0.0
    %303 = vmatprep.subr.mxu0 0.0
    %304 = vmatpush1.msra.mxu0 0.0
    %305 = vmatprep.subr.mxu0 0.0
    %306 = vmatpush1.msra.mxu0 0.0
    %307 = vmatprep.subr.mxu0 0.0
    %308 = vmatpush1.msra.mxu0 0.0
    %309 = vmatprep.subr.mxu0 0.0
    %310 = vmatpush1.msra.mxu0 0.0
    %311 = vmatprep.mubr.f32.mxu0 0.0
    %312 = vmatmul.mubr.f32.gmra.mrb[0].mxu0 %v152
    %v313 = vpop.f32.mrb[0].mxu0
    %v314 = vadd.f32 %v229, %v313
    %v315 = vpop.f32.mrb[0].mxu0
    %316 = vmatprep.mubr.f32.mxu0 0.0
    %317 = vmatmul.mubr.f32.gmra.mrb[0].mxu0 %v160
    %v318 = vpop.f32.mrb[0].mxu0
    %v319 = vadd.f32 %v234, %v318
    %v320 = vpop.f32.mrb[0].mxu0
    %321 = vmatprep.mubr.f32.mxu0 0.0
    %322 = vmatmul.mubr.f32.gmra.mrb[0].mxu0 %v155
    %v323 = vpop.f32.mrb[0].mxu0
    %v324 = vadd.f32 %v239, %v323
    %v325 = vpop.f32.mrb[0].mxu0
    %326 = vmatprep.mubr.f32.mxu0 0.0
    %327 = vmatmul.mubr.f32.gmra.mrb[0].mxu0 %v161
    %v328 = vpop.f32.mrb[0].mxu0
    %v329 = vadd.f32 %v244, %v328
    %v330 = vpop.f32.mrb[0].mxu0
    %331 = vdwg.mxu0
    %v332 = vadd.f32 %v314, %v319
    %v333 = vadd.f32 %v332, %v324
    %v334 = vadd.f32 %v333, %v329
    %v335 = vrot.slane %v334, 4
    %v336 = vadd.f32 %v334, %v335
    %v337 = vrot.slane %v336, 2
    %v338 = vadd.f32 %v336, %v337
    %v339 = vrot.slane %v338, 1
    %v340 = vadd.f32 %v338, %v339
    %v341 = vmul.f32 %v314, %v314
    %v342 = vmul.f32 %v319, %v319
    %v343 = vmul.f32 %v324, %v324
    %v344 = vmul.f32 %v329, %v329
    %v345 = vadd.f32 %v341, %v342
    %v346 = vadd.f32 %v345, %v343
    %v347 = vadd.f32 %v346, %v344
    %v348 = vrot.slane %v347, 4
    %v349 = vadd.f32 %v347, %v348
    %v350 = vrot.slane %v349, 2
    %v351 = vadd.f32 %v349, %v350
    %v352 = vrot.slane %v351, 1
    %v353 = vadd.f32 %v351, %v352
    %v354 = vsel %vm136, %v340, %v353
    %355 = vmatprep.subr.mxu0 0.0
    %356 = vmatpush1.msra.mxu0 %v114
    %357 = vmatprep.subr.mxu0 0.0
    %358 = vmatpush1.msra.mxu0 %v115
    %359 = vmatprep.subr.mxu0 0.0
    %360 = vmatpush1.msra.mxu0 %v116
    %361 = vmatprep.subr.mxu0 0.0
    %362 = vmatpush1.msra.mxu0 %v117
    %363 = vmatprep.subr.mxu0 0.0
    %364 = vmatpush1.msra.mxu0 %v118
    %365 = vmatprep.subr.mxu0 0.0
    %366 = vmatpush1.msra.mxu0 %v119
    %367 = vmatprep.subr.mxu0 0.0
    %368 = vmatpush1.msra.mxu0 %v120
    %369 = vmatprep.subr.mxu0 0.0
    %370 = vmatpush1.msra.mxu0 %v121
    %371 = vmatprep.subr.mxu0 0.0
    %372 = vmatpush1.msra.mxu0 %v122
    %373 = vmatprep.subr.mxu0 0.0
    %374 = vmatpush1.msra.mxu0 %v123
    %375 = vmatprep.subr.mxu0 0.0
    %376 = vmatpush1.msra.mxu0 %v124
    %377 = vmatprep.subr.mxu0 0.0
    %378 = vmatpush1.msra.mxu0 %v125
    %379 = vmatprep.subr.mxu0 0.0
    %380 = vmatpush1.msra.mxu0 %v126
    %381 = vmatprep.subr.mxu0 0.0
    %382 = vmatpush1.msra.mxu0 %v127
    %383 = vmatprep.subr.mxu0 0.0
    %384 = vmatpush1.msra.mxu0 %v128
    %385 = vmatprep.subr.mxu0 0.0
    %386 = vmatpush1.msra.mxu0 %v129
    %387 = vmatprep.subr.mxu0 0.0
    %388 = vmatpush1.msra.mxu0 0.0
    %389 = vmatprep.subr.mxu0 0.0
    %390 = vmatpush1.msra.mxu0 0.0
    %391 = vmatprep.subr.mxu0 0.0
    %392 = vmatpush1.msra.mxu0 0.0
    %393 = vmatprep.subr.mxu0 0.0
    %394 = vmatpush1.msra.mxu0 0.0
    %395 = vmatprep.subr.mxu0 0.0
    %396 = vmatpush1.msra.mxu0 0.0
    %397 = vmatprep.subr.mxu0 0.0
    %398 = vmatpush1.msra.mxu0 0.0
    %399 = vmatprep.subr.mxu0 0.0
    %400 = vmatpush1.msra.mxu0 0.0
    %401 = vmatprep.subr.mxu0 0.0
    %402 = vmatpush1.msra.mxu0 0.0
    %403 = vmatprep.subr.mxu0 0.0
    %404 = vmatpush1.msra.mxu0 0.0
    %405 = vmatprep.subr.mxu0 0.0
    %406 = vmatpush1.msra.mxu0 0.0
    %407 = vmatprep.subr.mxu0 0.0
    %408 = vmatpush1.msra.mxu0 0.0
    %409 = vmatprep.subr.mxu0 0.0
    %410 = vmatpush1.msra.mxu0 0.0
    %411 = vmatprep.subr.mxu0 0.0
    %412 = vmatpush1.msra.mxu0 0.0
    %413 = vmatprep.subr.mxu0 0.0
    %414 = vmatpush1.msra.mxu0 0.0
    %415 = vmatprep.subr.mxu0 0.0
    %416 = vmatpush1.msra.mxu0 0.0
    %417 = vmatprep.subr.mxu0 0.0
    %418 = vmatpush1.msra.mxu0 0.0
    %419 = vmatprep.mubr.f32.mxu0 0.0
    %420 = vmatmul.mubr.f32.gmra.mrb[0].mxu0 %v354
    %v421 = vpop.f32.mrb[0].mxu0
    %v422 = vadd.f32 0.0, %v421
    %v423 = vpop.f32.mrb[0].mxu0
    %424 = vdwg.mxu0
    %v425 = vmul.f32 %v422, %v422
    %v427 = vrot.slane %v425, 7
    %v429 = vsub.f32 %v422, %v427
    %v430 = vadd.f32 %v429, 1e-05
    %v431 = vrsqrt.pop %v430
    %v434 = vunpack.c.l.s4 1966171168
    %v435 = vunpack.c.0.s8 %v434
    %v436 = vlaneseq
    %v437 = vshrl.u32 %v436, 7
    %v438 = vsub.s32 %v435, %v437
    %v439 = vrot.slane %v431, %v438
    %v440 = vcombine.high %v439, %v439
    %v442 = vunpack.c.l.s4 1966171168
    %v443 = vunpack.c.0.s8 %v442
    %v444 = vlaneseq
    %v445 = vshrl.u32 %v444, 7
    %v446 = vsub.s32 %v443, %v445
    %v447 = vrot.slane %v440, %v446
    %v449 = vmul.f32 %v130, %v447
    %v450 = vmul.f32 %v422, %v449
    %v451 = vsub.f32 %v131, %v450
    %v453 = vlaneseq
    %v454 = vshrl.u32 %v453, 7
    %v455 = vsub.s32 0, %v454
    %v456 = vrot.slane %v449, %v455
    %v458 = vmul.f32 %v314, %v456
    %v459 = vmul.f32 %v319, %v456
    %v460 = vmul.f32 %v324, %v456
    %v461 = vmul.f32 %v329, %v456
    %v463 = vlaneseq
    %v464 = vshrl.u32 %v463, 7
    %v465 = vsub.s32 0, %v464
    %v466 = vrot.slane %v451, %v465
    %v468 = vadd.f32 %v458, %v466
    %v469 = vadd.f32 %v459, %v466
    %v470 = vadd.f32 %v460, %v466
    %v471 = vadd.f32 %v461, %v466
    %v472 = vmax.f32 %v468, 0.0
    %v473 = vmax.f32 %v469, 0.0
    %v474 = vmax.f32 %v470, 0.0
    %v475 = vmax.f32 %v471, 0.0
    %v480 = vrot.slane %v472, 7
    %v481 = vrot.slane %v473, 7
    %v482 = vsel %vm136, %v480, %v481
    %v483 = vrot.slane %v474, 7
    %v484 = vrot.slane %v475, 7
    %v485 = vsel %vm136, %v483, %v484
    %v490 = vsel %vm136, 0.0, %v480
    %v491 = vsel %vm136, 0.0, %v483
    %v492 = vrot.slane %v472, 1
    %v493 = vrot.slane %v473, 1
    %v494 = vsel %vm149, %v492, %v493
    %v495 = vrot.slane %v474, 1
    %v496 = vrot.slane %v475, 1
    %v497 = vsel %vm149, %v495, %v496
    %v502 = vsel %vm149, %v493, 0.0
    %v503 = vsel %vm149, %v496, 0.0
    %504 = vmatprep.subr.mxu0 0.0
    %505 = vmatpush1.msra.mxu0 %v66
    %506 = vmatprep.subr.mxu0 0.0
    %507 = vmatpush1.msra.mxu0 %v67
    %508 = vmatprep.subr.mxu0 0.0
    %509 = vmatpush1.msra.mxu0 %v68
    %510 = vmatprep.subr.mxu0 0.0
    %511 = vmatpush1.msra.mxu0 %v69
    %512 = vmatprep.subr.mxu0 0.0
    %513 = vmatpush1.msra.mxu0 %v70
    %514 = vmatprep.subr.mxu0 0.0
    %515 = vmatpush1.msra.mxu0 %v71
    %516 = vmatprep.subr.mxu0 0.0
    %517 = vmatpush1.msra.mxu0 %v72
    %518 = vmatprep.subr.mxu0 0.0
    %519 = vmatpush1.msra.mxu0 %v73
    %520 = vmatprep.subr.mxu0 0.0
    %521 = vmatpush1.msra.mxu0 %v74
    %522 = vmatprep.subr.mxu0 0.0
    %523 = vmatpush1.msra.mxu0 %v75
    %524 = vmatprep.subr.mxu0 0.0
    %525 = vmatpush1.msra.mxu0 %v76
    %526 = vmatprep.subr.mxu0 0.0
    %527 = vmatpush1.msra.mxu0 %v77
    %528 = vmatprep.subr.mxu0 0.0
    %529 = vmatpush1.msra.mxu0 %v78
    %530 = vmatprep.subr.mxu0 0.0
    %531 = vmatpush1.msra.mxu0 %v79
    %532 = vmatprep.subr.mxu0 0.0
    %533 = vmatpush1.msra.mxu0 %v80
    %534 = vmatprep.subr.mxu0 0.0
    %535 = vmatpush1.msra.mxu0 %v81
    %536 = vmatprep.subr.mxu0 0.0
    %537 = vmatpush1.msra.mxu0 %v82
    %538 = vmatprep.subr.mxu0 0.0
    %539 = vmatpush1.msra.mxu0 %v83
    %540 = vmatprep.subr.mxu0 0.0
    %541 = vmatpush1.msra.mxu0 %v84
    %542 = vmatprep.subr.mxu0 0.0
    %543 = vmatpush1.msra.mxu0 %v85
    %544 = vmatprep.subr.mxu0 0.0
    %545 = vmatpush1.msra.mxu0 %v86
    %546 = vmatprep.subr.mxu0 0.0
    %547 = vmatpush1.msra.mxu0 %v87
    %548 = vmatprep.subr.mxu0 0.0
    %549 = vmatpush1.msra.mxu0 %v88
    %550 = vmatprep.subr.mxu0 0.0
    %551 = vmatpush1.msra.mxu0 %v89
    %552 = vmatprep.subr.mxu0 0.0
    %553 = vmatpush1.msra.mxu0 %v90
    %554 = vmatprep.subr.mxu0 0.0
    %555 = vmatpush1.msra.mxu0 %v91
    %556 = vmatprep.subr.mxu0 0.0
    %557 = vmatpush1.msra.mxu0 %v92
    %558 = vmatprep.subr.mxu0 0.0
    %559 = vmatpush1.msra.mxu0 %v93
    %560 = vmatprep.subr.mxu0 0.0
    %561 = vmatpush1.msra.mxu0 %v94
    %562 = vmatprep.subr.mxu0 0.0
    %563 = vmatpush1.msra.mxu0 %v95
    %564 = vmatprep.subr.mxu0 0.0
    %565 = vmatpush1.msra.mxu0 %v96
    %566 = vmatprep.subr.mxu0 0.0
    %567 = vmatpush1.msra.mxu0 %v97
    %568 = vmatprep.mubr.f32.mxu0 %v472
    %569 = vmatmul.mubr.f32.gmra.mrb[0].mxu0 %v490
    %v570 = vpop.f32.mrb[0].mxu0
    %v571 = vadd.f32 0.0, %v570
    %v572 = vpop.f32.mrb[0].mxu0
    %573 = vmatprep.mubr.f32.mxu0 %v473
    %574 = vmatmul.mubr.f32.gmra.mrb[0].mxu0 %v482
    %v575 = vpop.f32.mrb[0].mxu0
    %v576 = vadd.f32 0.0, %v575
    %v577 = vpop.f32.mrb[0].mxu0
    %578 = vmatprep.mubr.f32.mxu0 %v474
    %579 = vmatmul.mubr.f32.gmra.mrb[0].mxu0 %v491
    %v580 = vpop.f32.mrb[0].mxu0
    %v581 = vadd.f32 0.0, %v580
    %v582 = vpop.f32.mrb[0].mxu0
    %583 = vmatprep.mubr.f32.mxu0 %v475
    %584 = vmatmul.mubr.f32.gmra.mrb[0].mxu0 %v485
    %v585 = vpop.f32.mrb[0].mxu0
    %v586 = vadd.f32 0.0, %v585
    %v587 = vpop.f32.mrb[0].mxu0
    %588 = vdwg.mxu0
    %589 = vmatprep.subr.mxu0 0.0
    %590 = vmatpush1.msra.mxu0 %v98
    %591 = vmatprep.subr.mxu0 0.0
    %592 = vmatpush1.msra.mxu0 %v99
    %593 = vmatprep.subr.mxu0 0.0
    %594 = vmatpush1.msra.mxu0 %v100
    %595 = vmatprep.subr.mxu0 0.0
    %596 = vmatpush1.msra.mxu0 %v101
    %597 = vmatprep.subr.mxu0 0.0
    %598 = vmatpush1.msra.mxu0 %v102
    %599 = vmatprep.subr.mxu0 0.0
    %600 = vmatpush1.msra.mxu0 %v103
    %601 = vmatprep.subr.mxu0 0.0
    %602 = vmatpush1.msra.mxu0 %v104
    %603 = vmatprep.subr.mxu0 0.0
    %604 = vmatpush1.msra.mxu0 %v105
    %605 = vmatprep.subr.mxu0 0.0
    %606 = vmatpush1.msra.mxu0 %v106
    %607 = vmatprep.subr.mxu0 0.0
    %608 = vmatpush1.msra.mxu0 %v107
    %609 = vmatprep.subr.mxu0 0.0
    %610 = vmatpush1.msra.mxu0 %v108
    %611 = vmatprep.subr.mxu0 0.0
    %612 = vmatpush1.msra.mxu0 %v109
    %613 = vmatprep.subr.mxu0 0.0
    %614 = vmatpush1.msra.mxu0 %v110
    %615 = vmatprep.subr.mxu0 0.0
    %616 = vmatpush1.msra.mxu0 %v111
    %617 = vmatprep.subr.mxu0 0.0
    %618 = vmatpush1.msra.mxu0 %v112
    %619 = vmatprep.subr.mxu0 0.0
    %620 = vmatpush1.msra.mxu0 %v113
    %621 = vmatprep.subr.mxu0 0.0
    %622 = vmatpush1.msra.mxu0 0.0
    %623 = vmatprep.subr.mxu0 0.0
    %624 = vmatpush1.msra.mxu0 0.0
    %625 = vmatprep.subr.mxu0 0.0
    %626 = vmatpush1.msra.mxu0 0.0
    %627 = vmatprep.subr.mxu0 0.0
    %628 = vmatpush1.msra.mxu0 0.0
    %629 = vmatprep.subr.mxu0 0.0
    %630 = vmatpush1.msra.mxu0 0.0
    %631 = vmatprep.subr.mxu0 0.0
    %632 = vmatpush1.msra.mxu0 0.0
    %633 = vmatprep.subr.mxu0 0.0
    %634 = vmatpush1.msra.mxu0 0.0
    %635 = vmatprep.subr.mxu0 0.0
    %636 = vmatpush1.msra.mxu0 0.0
    %637 = vmatprep.subr.mxu0 0.0
    %638 = vmatpush1.msra.mxu0 0.0
    %639 = vmatprep.subr.mxu0 0.0
    %640 = vmatpush1.msra.mxu0 0.0
    %641 = vmatprep.subr.mxu0 0.0
    %642 = vmatpush1.msra.mxu0 0.0
    %643 = vmatprep.subr.mxu0 0.0
    %644 = vmatpush1.msra.mxu0 0.0
    %645 = vmatprep.subr.mxu0 0.0
    %646 = vmatpush1.msra.mxu0 0.0
    %647 = vmatprep.subr.mxu0 0.0
    %648 = vmatpush1.msra.mxu0 0.0
    %649 = vmatprep.subr.mxu0 0.0
    %650 = vmatpush1.msra.mxu0 0.0
    %651 = vmatprep.subr.mxu0 0.0
    %652 = vmatpush1.msra.mxu0 0.0
    %653 = vmatprep.mubr.f32.mxu0 0.0
    %654 = vmatmul.mubr.f32.gmra.mrb[0].mxu0 %v494
    %v655 = vpop.f32.mrb[0].mxu0
    %v656 = vadd.f32 %v571, %v655
    %v657 = vpop.f32.mrb[0].mxu0
    %658 = vmatprep.mubr.f32.mxu0 0.0
    %659 = vmatmul.mubr.f32.gmra.mrb[0].mxu0 %v502
    %v660 = vpop.f32.mrb[0].mxu0
    %v661 = vadd.f32 %v576, %v660
    %v662 = vpop.f32.mrb[0].mxu0
    %663 = vmatprep.mubr.f32.mxu0 0.0
    %664 = vmatmul.mubr.f32.gmra.mrb[0].mxu0 %v497
    %v665 = vpop.f32.mrb[0].mxu0
    %v666 = vadd.f32 %v581, %v665
    %v667 = vpop.f32.mrb[0].mxu0
    %668 = vmatprep.mubr.f32.mxu0 0.0
    %669 = vmatmul.mubr.f32.gmra.mrb[0].mxu0 %v503
    %v670 = vpop.f32.mrb[0].mxu0
    %v671 = vadd.f32 %v586, %v670
    %v672 = vpop.f32.mrb[0].mxu0
    %673 = vdwg.mxu0
    %v674 = vadd.f32 %v656, %v661
    %v675 = vadd.f32 %v674, %v666
    %v676 = vadd.f32 %v675, %v671
    %v677 = vrot.slane %v676, 4
    %v678 = vadd.f32 %v676, %v677
    %v679 = vrot.slane %v678, 2
    %v680 = vadd.f32 %v678, %v679
    %v681 = vrot.slane %v680, 1
    %v682 = vadd.f32 %v680, %v681
    %v683 = vmul.f32 %v656, %v656
    %v684 = vmul.f32 %v661, %v661
    %v685 = vmul.f32 %v666, %v666
    %v686 = vmul.f32 %v671, %v671
    %v687 = vadd.f32 %v683, %v684
    %v688 = vadd.f32 %v687, %v685
    %v689 = vadd.f32 %v688, %v686
    %v690 = vrot.slane %v689, 4
    %v691 = vadd.f32 %v689, %v690
    %v692 = vrot.slane %v691, 2
    %v693 = vadd.f32 %v691, %v692
    %v694 = vrot.slane %v693, 1
    %v695 = vadd.f32 %v693, %v694
    %v696 = vsel %vm136, %v682, %v695
    %697 = vmatprep.subr.mxu0 0.0
    %698 = vmatpush1.msra.mxu0 %v114
    %699 = vmatprep.subr.mxu0 0.0
    %700 = vmatpush1.msra.mxu0 %v115
    %701 = vmatprep.subr.mxu0 0.0
    %702 = vmatpush1.msra.mxu0 %v116
    %703 = vmatprep.subr.mxu0 0.0
    %704 = vmatpush1.msra.mxu0 %v117
    %705 = vmatprep.subr.mxu0 0.0
    %706 = vmatpush1.msra.mxu0 %v118
    %707 = vmatprep.subr.mxu0 0.0
    %708 = vmatpush1.msra.mxu0 %v119
    %709 = vmatprep.subr.mxu0 0.0
    %710 = vmatpush1.msra.mxu0 %v120
    %711 = vmatprep.subr.mxu0 0.0
    %712 = vmatpush1.msra.mxu0 %v121
    %713 = vmatprep.subr.mxu0 0.0
    %714 = vmatpush1.msra.mxu0 %v122
    %715 = vmatprep.subr.mxu0 0.0
    %716 = vmatpush1.msra.mxu0 %v123
    %717 = vmatprep.subr.mxu0 0.0
    %718 = vmatpush1.msra.mxu0 %v124
    %719 = vmatprep.subr.mxu0 0.0
    %720 = vmatpush1.msra.mxu0 %v125
    %721 = vmatprep.subr.mxu0 0.0
    %722 = vmatpush1.msra.mxu0 %v126
    %723 = vmatprep.subr.mxu0 0.0
    %724 = vmatpush1.msra.mxu0 %v127
    %725 = vmatprep.subr.mxu0 0.0
    %726 = vmatpush1.msra.mxu0 %v128
    %727 = vmatprep.subr.mxu0 0.0
    %728 = vmatpush1.msra.mxu0 %v129
    %729 = vmatprep.subr.mxu0 0.0
    %730 = vmatpush1.msra.mxu0 0.0
    %731 = vmatprep.subr.mxu0 0.0
    %732 = vmatpush1.msra.mxu0 0.0
    %733 = vmatprep.subr.mxu0 0.0
    %734 = vmatpush1.msra.mxu0 0.0
    %735 = vmatprep.subr.mxu0 0.0
    %736 = vmatpush1.msra.mxu0 0.0
    %737 = vmatprep.subr.mxu0 0.0
    %738 = vmatpush1.msra.mxu0 0.0
    %739 = vmatprep.subr.mxu0 0.0
    %740 = vmatpush1.msra.mxu0 0.0
    %741 = vmatprep.subr.mxu0 0.0
    %742 = vmatpush1.msra.mxu0 0.0
    %743 = vmatprep.subr.mxu0 0.0
    %744 = vmatpush1.msra.mxu0 0.0
    %745 = vmatprep.subr.mxu0 0.0
    %746 = vmatpush1.msra.mxu0 0.0
    %747 = vmatprep.subr.mxu0 0.0
    %748 = vmatpush1.msra.mxu0 0.0
    %749 = vmatprep.subr.mxu0 0.0
    %750 = vmatpush1.msra.mxu0 0.0
    %751 = vmatprep.subr.mxu0 0.0
    %752 = vmatpush1.msra.mxu0 0.0
    %753 = vmatprep.subr.mxu0 0.0
    %754 = vmatpush1.msra.mxu0 0.0
    %755 = vmatprep.subr.mxu0 0.0
    %756 = vmatpush1.msra.mxu0 0.0
    %757 = vmatprep.subr.mxu0 0.0
    %758 = vmatpush1.msra.mxu0 0.0
    %759 = vmatprep.subr.mxu0 0.0
    %760 = vmatpush1.msra.mxu0 0.0
    %761 = vmatprep.mubr.f32.mxu0 0.0
    %762 = vmatmul.mubr.f32.gmra.mrb[0].mxu0 %v696
    %v763 = vpop.f32.mrb[0].mxu0
    %v764 = vadd.f32 0.0, %v763
    %v765 = vpop.f32.mrb[0].mxu0
    %766 = vdwg.mxu0
    %v767 = vmul.f32 %v764, %v764
    %v769 = vrot.slane %v767, 7
    %v771 = vsub.f32 %v764, %v769
    %v772 = vadd.f32 %v771, 1e-05
    %v773 = vrsqrt.pop %v772
    %v776 = vunpack.c.l.s4 1966171168
    %v777 = vunpack.c.0.s8 %v776
    %v778 = vlaneseq
    %v779 = vshrl.u32 %v778, 7
    %v780 = vsub.s32 %v777, %v779
    %v781 = vrot.slane %v773, %v780
    %v782 = vcombine.high %v781, %v781
    %v784 = vunpack.c.l.s4 1966171168
    %v785 = vunpack.c.0.s8 %v784
    %v786 = vlaneseq
    %v787 = vshrl.u32 %v786, 7
    %v788 = vsub.s32 %v785, %v787
    %v789 = vrot.slane %v782, %v788
    %v791 = vmul.f32 %v130, %v789
    %v792 = vmul.f32 %v764, %v791
    %v793 = vsub.f32 %v131, %v792
    %v795 = vlaneseq
    %v796 = vshrl.u32 %v795, 7
    %v797 = vsub.s32 0, %v796
    %v798 = vrot.slane %v791, %v797
    %v800 = vmul.f32 %v656, %v798
    %v801 = vmul.f32 %v661, %v798
    %v802 = vmul.f32 %v666, %v798
    %v803 = vmul.f32 %v671, %v798
    %v805 = vlaneseq
    %v806 = vshrl.u32 %v805, 7
    %v807 = vsub.s32 0, %v806
    %v808 = vrot.slane %v793, %v807
    %v810 = vadd.f32 %v800, %v808
    %v811 = vadd.f32 %v801, %v808
    %v812 = vadd.f32 %v802, %v808
    %v813 = vadd.f32 %v803, %v808
    %v814 = vadd.f32 %v810, %v62
    %v815 = vadd.f32 %v811, %v63
    %v816 = vadd.f32 %v812, %v64
    %v817 = vadd.f32 %v813, %v65
    %v818 = vmax.f32 %v814, 0.0
    %v819 = vmax.f32 %v815, 0.0
    %v820 = vmax.f32 %v816, 0.0
    %v821 = vmax.f32 %v817, 0.0
    %822 = vst [vmem:[#allocation8] sm:$0xff] %v818
    %823 = vst [vmem:[#allocation8 + $0x8] sm:$0xff] %v819
    %824 = vst [vmem:[#allocation8 + $0x10] sm:$0xff] %v820
    %825 = vst [vmem:[#allocation8 + $0x18] sm:$0xff] %v821
    // Predicated region
    $region34: #{tpu_custom_call.1} parent=1 // pred_check
      _
    $region35: #{tpu_custom_call.1} parent=1 // pred_check_branch
      %827 = sbr.rel (0) target = $region37
    $region36: #{tpu_custom_call.1} parent=1 // pred_region
      %s829 = ssub.s32 512, 512
      %830 = vsyncadd [#allocation4], %s829
      %s831 = sshll.u32 [#allocation8], 4
      %s832 = int_to_ptr.vmem [resolvable:$true] %s831
      %837 = dma.vmem_to_hbm [thread:$0]  %s832, 512, %s5, [#allocation4], 128, 128, 8
    $region37: #{tpu_custom_call.1} parent=1 // pred_fallthru
      _
    // Predicated region
    $region38: #{tpu_custom_call.1} parent=1 // pred_check
      _
    $region39: #{tpu_custom_call.1} parent=1 // pred_check_branch
      %839 = sbr.rel (0) target = $region41
    $region40: #{tpu_custom_call.1} parent=1 // pred_region
      %840 = dma.done [#allocation4], 512
    $region41: #{tpu_custom_call.1} parent=1 // pred_fallthru
      _
    %841 = vsyncpa [#allocation3], 1
    %842 = vsyncpa [#allocation6], 1
    %843 = vsyncpa [#allocation4], 1

</llo_original>
